<compile_context>
chip_gen: v5e
topology: v5e:2x2
jax: 0.10.0
libtpu: 0.0.40
codegen_flags: <defaults>
</compile_context>

<pallas_src>
import jax
import jax.numpy as jnp
from jax.experimental import pallas as pl
from jax.experimental.pallas import tpu as pltpu


def _round_up(x: int, m: int) -> int:
    return (x + m - 1) // m * m


def _custom_online_kernel(
    x_ref,       # [TILE_N, in_dim]     input rows (f32 or bf16)
    w_enc_ref,   # [in_dim, 2*hid_p]    bf16  [W_on | W_tg] (pre-transposed)
    b_enc_ref,   # [1, 2*hid_p]         f32   [b_on | b_tg]
    w1_ref,      # [hid_p, hid_p]       bf16  predictor.0 weight
    b1_ref,      # [1, hid_p]           f32
    alpha_ref,   # [1, 1]               f32   PReLU slope (SMEM scalar)
    w2_ref,      # [hid_p, hid_p]       bf16  predictor.2 weight
    b2_ref,      # [1, hid_p]           f32
    h_ref,       # out: [TILE_N, hid_p]
    h_pred_ref,  # out: [TILE_N, hid_p]
    h_tgt_ref,   # out: [TILE_N, hid_p]
):
    hid_p = h_ref.shape[1]
    x = x_ref[...].astype(jnp.bfloat16)

    # ---- fused online + target encoder: one LHS push, 2*hid_p-wide RHS ----
    enc = jnp.dot(x, w_enc_ref[...],
                  preferred_element_type=jnp.float32) + b_enc_ref[...]
    h = enc[:, :hid_p]
    # Write h and h_target early: their writeback DMAs hide under the two
    # dependent predictor matmuls below.
    h_ref[...] = h.astype(h_ref.dtype)
    h_tgt_ref[...] = enc[:, hid_p:].astype(h_tgt_ref.dtype)

    # ---- predictor: Linear -> PReLU -> Linear (bf16 MXU operands, f32 acc) --
    alpha = alpha_ref[0, 0]
    z = jnp.dot(h.astype(jnp.bfloat16), w1_ref[...],
                preferred_element_type=jnp.float32) + b1_ref[...]
    z = jnp.where(z >= 0.0, z, alpha * z)                    # shared-slope PReLU
    h_pred_ref[...] = (
        jnp.dot(z.astype(jnp.bfloat16), w2_ref[...],
                preferred_element_type=jnp.float32) + b2_ref[...]
    ).astype(h_pred_ref.dtype)


def custom_online_forward(x, params, *, tile_n=512, out_dtype=jnp.float32,
                          interpret=False):
    """Fused CustomOnline forward.  x: [N, in_dim].

    Returns (h, h_pred, h_target), each [N, hidden] in `out_dtype`.
    """
    n, in_dim = x.shape
    hidden = params["w_on"].shape[1]
    hid_p = _round_up(hidden, 128)          # lane-dense output / MXU N dim

    def pad_cols(a, cols, dtype):
        return jnp.pad(a, ((0, 0), (0, cols - a.shape[1]))).astype(dtype)

    def pad_both(a, rows, cols, dtype):
        return jnp.pad(a, ((0, rows - a.shape[0]),
                           (0, cols - a.shape[1]))).astype(dtype)

    # Fused encoder weight [in_dim, 2*hid_p]; K dim left unpadded so x is
    # consumed straight from HBM (no wrapper-side pad/cast pass over x).
    w_enc = jnp.concatenate(
        [pad_cols(params["w_on"], hid_p, jnp.bfloat16),
         pad_cols(params["w_tg"], hid_p, jnp.bfloat16)], axis=1)
    b_enc = jnp.concatenate(
        [pad_cols(params["b_on"], hid_p, jnp.float32),
         pad_cols(params["b_tg"], hid_p, jnp.float32)], axis=1)
    w1 = pad_both(params["w1"], hid_p, hid_p, jnp.bfloat16)
    w2 = pad_both(params["w2"], hid_p, hid_p, jnp.bfloat16)
    b1 = pad_cols(params["b1"], hid_p, jnp.float32)
    b2 = pad_cols(params["b2"], hid_p, jnp.float32)
    alpha = params["alpha"].reshape(1, 1).astype(jnp.float32)

    x_bytes = jnp.dtype(x.dtype).itemsize
    out_bytes = jnp.dtype(out_dtype).itemsize

    # ---- VMEM budget: single-buffered weights + double-buffered row tiles ---
    weight_bytes = (in_dim * 2 * hid_p * 2          # w_enc  bf16
                    + 2 * hid_p * hid_p * 2         # w1, w2 bf16
                    + (2 * hid_p + 2 * hid_p) * 4)  # biases f32
    try:
        vmem_cap = pltpu.get_tpu_info().vmem_capacity_bytes
    except Exception:
        vmem_cap = 64 << 20                         # conservative (v7x per-TC)
    budget = vmem_cap - (8 << 20)                   # headroom for compiler scratch

    def act_bytes(t):
        io = 2 * (t * in_dim * x_bytes + 3 * t * hid_p * out_bytes)  # dbl-buf tiles
        tmp = t * (2 * hid_p + hid_p) * 4                            # enc + z (f32)
        return io + tmp

    # Largest row tile (multiple of 16, bf16 sublane packing) that fits VMEM.
    cand = [c for c in (1024, 512, 256, 128, 64, 32, 16) if c <= max(16, tile_n)]
    chosen = cand[-1]
    for c in cand:
        if weight_bytes + act_bytes(c) <= budget:
            chosen = c
            break
    tile_n = min(chosen, _round_up(max(n, 16), 16))
    # TODO(synk): add a K-tiled / split-call fallback for very large hidden
    # (>~3k) where even single-buffered weights overflow v7x's 64 MiB VMEM.

    grid = (pl.cdiv(n, tile_n),)                    # partial last block is OK:
                                                    # per-row math, OOB rows dropped
    out_shape = tuple(jax.ShapeDtypeStruct((n, hid_p), out_dtype) for _ in range(3))

    cost = pl.CostEstimate(
        flops=2 * n * (in_dim * 2 * hid_p + 2 * hid_p * hid_p),
        transcendentals=0,
        bytes_accessed=(n * in_dim * x_bytes + weight_bytes
                        + 3 * n * hid_p * out_bytes),
    )

    def _call(single_buffer_weights):
        # Constant-index weights/biases stay VMEM-resident across the whole
        # grid; single-buffer them (double-buffering a constant block is waste).
        resident_kw = ({"pipeline_mode": pl.Buffered(1)}
                       if single_buffer_weights else {})
        x_spec = pl.BlockSpec((tile_n, in_dim), lambda i: (i, 0))
        out_spec = pl.BlockSpec((tile_n, hid_p), lambda i: (i, 0))
        w_enc_spec = pl.BlockSpec((in_dim, 2 * hid_p), lambda i: (0, 0), **resident_kw)
        b_enc_spec = pl.BlockSpec((1, 2 * hid_p), lambda i: (0, 0), **resident_kw)
        w_h_spec = pl.BlockSpec((hid_p, hid_p), lambda i: (0, 0), **resident_kw)
        b_spec = pl.BlockSpec((1, hid_p), lambda i: (0, 0), **resident_kw)
        alpha_spec = pl.BlockSpec(memory_space=pltpu.MemorySpace.SMEM)

        wb = weight_bytes if single_buffer_weights else 2 * weight_bytes
        vmem_limit = int(min(vmem_cap - (1 << 20),
                             max(32 << 20, wb + act_bytes(tile_n) + (8 << 20))))

        return pl.pallas_call(
            _custom_online_kernel,
            grid=grid,
            in_specs=[x_spec,
                      w_enc_spec, b_enc_spec,     # fused encoders
                      w_h_spec, b_spec,           # predictor.0
                      alpha_spec,                 # PReLU slope (SMEM scalar)
                      w_h_spec, b_spec],          # predictor.2
            out_specs=(out_spec, out_spec, out_spec),
            out_shape=out_shape,
            compiler_params=pltpu.CompilerParams(
                dimension_semantics=("parallel",),   # row tiles across TCs (v7x)
                vmem_limit_bytes=vmem_limit),
            cost_estimate=cost,
            interpret=interpret,
        )(x, w_enc, b_enc, w1, b1, alpha, w2, b2)

    try:
        h_p, h_pred_p, h_tgt_p = _call(True)
    except Exception:
        # Fallback for jax versions without BlockSpec(pipeline_mode=...).
        h_p, h_pred_p, h_tgt_p = _call(False)

    if hid_p != hidden:                          # strip feature padding only
        return h_p[:, :hidden], h_pred_p[:, :hidden], h_tgt_p[:, :hidden]
    return h_p, h_pred_p, h_tgt_p


def init_params(key, in_dim, hidden_dim):
    """Deterministic synthetic parameters matching the module's shapes."""
    ks = jax.random.split(key, 8)
    scale_in = 1.0 / jnp.sqrt(in_dim)
    scale_h = 1.0 / jnp.sqrt(hidden_dim)
    u = jax.random.uniform
    return {
        # encoders: Linear(in_dim, hidden_dim), stored pre-transposed [in, out]
        "w_on": u(ks[0], (in_dim, hidden_dim), jnp.float32, -scale_in, scale_in),
        "b_on": u(ks[1], (1, hidden_dim), jnp.float32, -scale_in, scale_in),
        "w_tg": u(ks[2], (in_dim, hidden_dim), jnp.float32, -scale_in, scale_in),
        "b_tg": u(ks[3], (1, hidden_dim), jnp.float32, -scale_in, scale_in),
        # predictor: Linear(hidden, hidden) -> PReLU -> Linear(hidden, hidden)
        "w1": u(ks[4], (hidden_dim, hidden_dim), jnp.float32, -scale_h, scale_h),
        "b1": u(ks[5], (1, hidden_dim), jnp.float32, -scale_h, scale_h),
        "alpha": jnp.full((1, 1), 0.25, jnp.float32),   # torch PReLU default
        "w2": u(ks[6], (hidden_dim, hidden_dim), jnp.float32, -scale_h, scale_h),
        "b2": u(ks[7], (1, hidden_dim), jnp.float32, -scale_h, scale_h),
    }


def reference_forward_f32(x, p):
    """Pure-JAX full-f32 reference (module semantics)."""
    h = x @ p["w_on"] + p["b_on"]
    z = h @ p["w1"] + p["b1"]
    z = jnp.where(z >= 0.0, z, p["alpha"] * z)
    h_pred = z @ p["w2"] + p["b2"]
    h_tgt = x @ p["w_tg"] + p["b_tg"]
    return h, h_pred, h_tgt


def reference_forward_bf16(x, p):
    """Pure-JAX reference mimicking the kernel's bf16-operand / f32-acc matmuls."""
    bf = jnp.bfloat16
    dot = lambda a, b: jnp.dot(a.astype(bf), b.astype(bf),
                               preferred_element_type=jnp.float32)
    h = dot(x, p["w_on"]) + p["b_on"]
    z = dot(h, p["w1"]) + p["b1"]
    z = jnp.where(z >= 0.0, z, p["alpha"] * z)
    h_pred = dot(z, p["w2"]) + p["b2"]
    h_tgt = dot(x, p["w_tg"]) + p["b_tg"]
    return h, h_pred, h_tgt


if __name__ == "__main__":
    N, IN_DIM, HIDDEN = 16, 16, 32   # small demo shapes (hidden padded to 128)

    key = jax.random.PRNGKey(0)
    k_x, k_p = jax.random.split(key)
    x = jax.random.normal(k_x, (N, IN_DIM), jnp.float32)
    params = init_params(k_p, IN_DIM, HIDDEN)

    h, h_pred, h_target = custom_online_forward(x, params)
    jax.block_until_ready((h, h_pred, h_target))

    # tight check vs. a reference that matches the kernel's bf16 matmul inputs
    h_b, h_pred_b, h_tgt_b = reference_forward_bf16(x, params)
    assert jnp.allclose(h, h_b, atol=2e-3, rtol=2e-3)
    assert jnp.allclose(h_pred, h_pred_b, atol=2e-3, rtol=2e-3)
    assert jnp.allclose(h_target, h_tgt_b, atol=2e-3, rtol=2e-3)

    # loose check vs. the full-f32 module semantics
    h_r, h_pred_r, h_tgt_r = reference_forward_f32(x, params)
    assert jnp.allclose(h, h_r, atol=5e-2, rtol=5e-2)
    assert jnp.allclose(h_pred, h_pred_r, atol=5e-2, rtol=5e-2)
    assert jnp.allclose(h_target, h_tgt_r, atol=5e-2, rtol=5e-2)

    # TODO(synk): update_target_encoder (EMA) and get_loss are training-side
    # utilities, not part of the forward hot path, so they are not kernelized.
    print("KERNEL_OK")
</pallas_src>

<mosaic_0001>
module attributes {stable_mosaic.version = 11 : i64} {
  func.func @_custom_online_kernel(%arg0: i32, %arg1: memref<16x16xf32, #tpu.memory_space<vmem>>, %arg2: memref<16x256xbf16, #tpu.memory_space<vmem>>, %arg3: memref<1x256xf32, #tpu.memory_space<vmem>>, %arg4: memref<128x128xbf16, #tpu.memory_space<vmem>>, %arg5: memref<1x128xf32, #tpu.memory_space<vmem>>, %arg6: memref<1x1xf32, #tpu.memory_space<smem>>, %arg7: memref<128x128xbf16, #tpu.memory_space<vmem>>, %arg8: memref<1x128xf32, #tpu.memory_space<vmem>>, %arg9: memref<16x128xf32, #tpu.memory_space<vmem>>, %arg10: memref<16x128xf32, #tpu.memory_space<vmem>>, %arg11: memref<16x128xf32, #tpu.memory_space<vmem>>) attributes {dimension_semantics = [#tpu.dimension_semantics<parallel>], iteration_bounds = array<i64: 1>, scalar_prefetch = 0 : i64, scratch_operands = 0 : i64, tpu.core_type = #tpu.core_type<tc>, window_params = [{transform_indices = @transform_0, window_bounds = array<i64: 16, 16>}, {pipeline_mode = #tpu.pipeline_mode<synchronous>, transform_indices = @transform_1, window_bounds = array<i64: 16, 256>}, {pipeline_mode = #tpu.pipeline_mode<synchronous>, transform_indices = @transform_2, window_bounds = array<i64: 1, 256>}, {pipeline_mode = #tpu.pipeline_mode<synchronous>, transform_indices = @transform_3, window_bounds = array<i64: 128, 128>}, {pipeline_mode = #tpu.pipeline_mode<synchronous>, transform_indices = @transform_4, window_bounds = array<i64: 1, 128>}, {transform_indices = @transform_5, window_bounds = array<i64: 1, 1>}, {pipeline_mode = #tpu.pipeline_mode<synchronous>, transform_indices = @transform_6, window_bounds = array<i64: 128, 128>}, {pipeline_mode = #tpu.pipeline_mode<synchronous>, transform_indices = @transform_7, window_bounds = array<i64: 1, 128>}, {transform_indices = @transform_8, window_bounds = array<i64: 16, 128>}, {transform_indices = @transform_9, window_bounds = array<i64: 16, 128>}, {transform_indices = @transform_10, window_bounds = array<i64: 16, 128>}]} {
    %c0 = arith.constant 0 : index
    %c0_0 = arith.constant 0 : index
    %0 = vector.load %arg1[%c0, %c0_0] : memref<16x16xf32, #tpu.memory_space<vmem>>, vector<16x16xf32>
    %1 = arith.truncf %0 : vector<16x16xf32> to vector<16x16xbf16>
    %c0_1 = arith.constant 0 : index
    %c0_2 = arith.constant 0 : index
    %2 = vector.load %arg2[%c0_1, %c0_2] : memref<16x256xbf16, #tpu.memory_space<vmem>>, vector<16x256xbf16>
    %cst = arith.constant dense<0.000000e+00> : vector<16x256xf32>
    %3 = tpu.matmul %1, %2, %cst {dimension_numbers = #tpu.dot_dimension_numbers<[1], [0], [0], [1], [0, 0, 1, 1], [], []>} : vector<16x16xbf16>, vector<16x256xbf16>, vector<16x256xf32> -> vector<16x256xf32>
    %c0_3 = arith.constant 0 : index
    %c0_4 = arith.constant 0 : index
    %4 = vector.load %arg3[%c0_3, %c0_4] : memref<1x256xf32, #tpu.memory_space<vmem>>, vector<1x256xf32>
    %5 = vector.broadcast %4 : vector<1x256xf32> to vector<16x256xf32>
    %6 = arith.addf %3, %5 : vector<16x256xf32>
    %7 = vector.extract_strided_slice %6 {offsets = [0, 0], sizes = [16, 128], strides = [1, 1]} : vector<16x256xf32> to vector<16x128xf32>
    %c0_5 = arith.constant 0 : index
    %c0_6 = arith.constant 0 : index
    %8 = vector.load %arg9[%c0_5, %c0_6] : memref<16x128xf32, #tpu.memory_space<vmem>>, vector<16x128xf32>
    tpu.vector_store %arg9[%c0_5, %c0_6], %7 {strides = array<i32>} : memref<16x128xf32, #tpu.memory_space<vmem>>, vector<16x128xf32>,
    %9 = vector.extract_strided_slice %6 {offsets = [0, 128], sizes = [16, 128], strides = [1, 1]} : vector<16x256xf32> to vector<16x128xf32>
    %c0_7 = arith.constant 0 : index
    %c0_8 = arith.constant 0 : index
    %10 = vector.load %arg11[%c0_7, %c0_8] : memref<16x128xf32, #tpu.memory_space<vmem>>, vector<16x128xf32>
    tpu.vector_store %arg11[%c0_7, %c0_8], %9 {strides = array<i32>} : memref<16x128xf32, #tpu.memory_space<vmem>>, vector<16x128xf32>,
    %c0_9 = arith.constant 0 : index
    %c0_10 = arith.constant 0 : index
    %11 = memref.load %arg6[%c0_9, %c0_10] : memref<1x1xf32, #tpu.memory_space<smem>>
    %12 = arith.truncf %7 : vector<16x128xf32> to vector<16x128xbf16>
    %c0_11 = arith.constant 0 : index
    %c0_12 = arith.constant 0 : index
    %13 = vector.load %arg4[%c0_11, %c0_12] : memref<128x128xbf16, #tpu.memory_space<vmem>>, vector<128x128xbf16>
    %cst_13 = arith.constant dense<0.000000e+00> : vector<16x128xf32>
    %14 = tpu.matmul %12, %13, %cst_13 {dimension_numbers = #tpu.dot_dimension_numbers<[1], [0], [0], [1], [0, 0, 1, 1], [], []>} : vector<16x128xbf16>, vector<128x128xbf16>, vector<16x128xf32> -> vector<16x128xf32>
    %c0_14 = arith.constant 0 : index
    %c0_15 = arith.constant 0 : index
    %15 = vector.load %arg5[%c0_14, %c0_15] : memref<1x128xf32, #tpu.memory_space<vmem>>, vector<1x128xf32>
    %16 = vector.broadcast %15 : vector<1x128xf32> to vector<16x128xf32>
    %17 = arith.addf %14, %16 : vector<16x128xf32>
    %cst_16 = arith.constant 0.000000e+00 : f32
    %18 = vector.broadcast %cst_16 : f32 to vector<16x128xf32>
    %19 = arith.cmpf oge, %17, %18 : vector<16x128xf32>
    %20 = vector.broadcast %11 : f32 to vector<16x128xf32>
    %21 = arith.mulf %20, %17 : vector<16x128xf32>
    %22 = arith.select %19, %17, %21 : vector<16x128xi1>, vector<16x128xf32>
    %23 = arith.truncf %22 : vector<16x128xf32> to vector<16x128xbf16>
    %c0_17 = arith.constant 0 : index
    %c0_18 = arith.constant 0 : index
    %24 = vector.load %arg7[%c0_17, %c0_18] : memref<128x128xbf16, #tpu.memory_space<vmem>>, vector<128x128xbf16>
    %cst_19 = arith.constant dense<0.000000e+00> : vector<16x128xf32>
    %25 = tpu.matmul %23, %24, %cst_19 {dimension_numbers = #tpu.dot_dimension_numbers<[1], [0], [0], [1], [0, 0, 1, 1], [], []>} : vector<16x128xbf16>, vector<128x128xbf16>, vector<16x128xf32> -> vector<16x128xf32>
    %c0_20 = arith.constant 0 : index
    %c0_21 = arith.constant 0 : index
    %26 = vector.load %arg8[%c0_20, %c0_21] : memref<1x128xf32, #tpu.memory_space<vmem>>, vector<1x128xf32>
    %27 = vector.broadcast %26 : vector<1x128xf32> to vector<16x128xf32>
    %28 = arith.addf %25, %27 : vector<16x128xf32>
    %c0_22 = arith.constant 0 : index
    %c0_23 = arith.constant 0 : index
    %29 = vector.load %arg10[%c0_22, %c0_23] : memref<16x128xf32, #tpu.memory_space<vmem>>, vector<16x128xf32>
    tpu.vector_store %arg10[%c0_22, %c0_23], %28 {strides = array<i32>} : memref<16x128xf32, #tpu.memory_space<vmem>>, vector<16x128xf32>,
    return
  }
  func.func @transform_0(%arg0: i32) -> (i32, i32) {
    %c0_i32 = arith.constant 0 : i32
    %c0_i32_0 = arith.constant 0 : i32
    return %arg0, %c0_i32 : i32, i32
  }
  func.func @transform_1(%arg0: i32) -> (i32, i32) {
    %c0_i32 = arith.constant 0 : i32
    %c0_i32_0 = arith.constant 0 : i32
    %c0_i32_1 = arith.constant 0 : i32
    return %c0_i32, %c0_i32_0 : i32, i32
  }
  func.func @transform_2(%arg0: i32) -> (i32, i32) {
    %c0_i32 = arith.constant 0 : i32
    %c0_i32_0 = arith.constant 0 : i32
    %c0_i32_1 = arith.constant 0 : i32
    return %c0_i32, %c0_i32_0 : i32, i32
  }
  func.func @transform_3(%arg0: i32) -> (i32, i32) {
    %c0_i32 = arith.constant 0 : i32
    %c0_i32_0 = arith.constant 0 : i32
    %c0_i32_1 = arith.constant 0 : i32
    return %c0_i32, %c0_i32_0 : i32, i32
  }
  func.func @transform_4(%arg0: i32) -> (i32, i32) {
    %c0_i32 = arith.constant 0 : i32
    %c0_i32_0 = arith.constant 0 : i32
    %c0_i32_1 = arith.constant 0 : i32
    return %c0_i32, %c0_i32_0 : i32, i32
  }
  func.func @transform_5(%arg0: i32) -> (i32, i32) {
    %c0_i32 = arith.constant 0 : i32
    %c0_i32_0 = arith.constant 0 : i32
    %c0_i32_1 = arith.constant 0 : i32
    return %c0_i32, %c0_i32_0 : i32, i32
  }
  func.func @transform_6(%arg0: i32) -> (i32, i32) {
    %c0_i32 = arith.constant 0 : i32
    %c0_i32_0 = arith.constant 0 : i32
    %c0_i32_1 = arith.constant 0 : i32
    return %c0_i32, %c0_i32_0 : i32, i32
  }
  func.func @transform_7(%arg0: i32) -> (i32, i32) {
    %c0_i32 = arith.constant 0 : i32
    %c0_i32_0 = arith.constant 0 : i32
    %c0_i32_1 = arith.constant 0 : i32
    return %c0_i32, %c0_i32_0 : i32, i32
  }
  func.func @transform_8(%arg0: i32) -> (i32, i32) {
    %c0_i32 = arith.constant 0 : i32
    %c0_i32_0 = arith.constant 0 : i32
    return %arg0, %c0_i32 : i32, i32
  }
  func.func @transform_9(%arg0: i32) -> (i32, i32) {
    %c0_i32 = arith.constant 0 : i32
    %c0_i32_0 = arith.constant 0 : i32
    return %arg0, %c0_i32 : i32, i32
  }
  func.func @transform_10(%arg0: i32) -> (i32, i32) {
    %c0_i32 = arith.constant 0 : i32
    %c0_i32_0 = arith.constant 0 : i32
    return %arg0, %c0_i32 : i32, i32
  }
}

module attributes {stable_mosaic.version = 11 : i64} {
  func.func @_custom_online_kernel(%arg0: i32, %arg1: memref<16x16xf32, #tpu.memory_space<vmem>>, %arg2: memref<16x256xbf16, #tpu.memory_space<vmem>>, %arg3: memref<1x256xf32, #tpu.memory_space<vmem>>, %arg4: memref<128x128xbf16, #tpu.memory_space<vmem>>, %arg5: memref<1x128xf32, #tpu.memory_space<vmem>>, %arg6: memref<1x1xf32, #tpu.memory_space<smem>>, %arg7: memref<128x128xbf16, #tpu.memory_space<vmem>>, %arg8: memref<1x128xf32, #tpu.memory_space<vmem>>, %arg9: memref<16x128xf32, #tpu.memory_space<vmem>>, %arg10: memref<16x128xf32, #tpu.memory_space<vmem>>, %arg11: memref<16x128xf32, #tpu.memory_space<vmem>>) attributes {dimension_semantics = [#tpu.dimension_semantics<parallel>], iteration_bounds = array<i64: 1>, scalar_prefetch = 0 : i64, scratch_operands = 0 : i64, tpu.core_type = #tpu.core_type<tc>, window_params = [{transform_indices = @transform_0, window_bounds = array<i64: 16, 16>}, {pipeline_mode = #tpu.pipeline_mode<synchronous>, transform_indices = @transform_1, window_bounds = array<i64: 16, 256>}, {pipeline_mode = #tpu.pipeline_mode<synchronous>, transform_indices = @transform_2, window_bounds = array<i64: 1, 256>}, {pipeline_mode = #tpu.pipeline_mode<synchronous>, transform_indices = @transform_3, window_bounds = array<i64: 128, 128>}, {pipeline_mode = #tpu.pipeline_mode<synchronous>, transform_indices = @transform_4, window_bounds = array<i64: 1, 128>}, {transform_indices = @transform_5, window_bounds = array<i64: 1, 1>}, {pipeline_mode = #tpu.pipeline_mode<synchronous>, transform_indices = @transform_6, window_bounds = array<i64: 128, 128>}, {pipeline_mode = #tpu.pipeline_mode<synchronous>, transform_indices = @transform_7, window_bounds = array<i64: 1, 128>}, {transform_indices = @transform_8, window_bounds = array<i64: 16, 128>}, {transform_indices = @transform_9, window_bounds = array<i64: 16, 128>}, {transform_indices = @transform_10, window_bounds = array<i64: 16, 128>}]} {
    %c0 = arith.constant 0 : index
    %c0_0 = arith.constant 0 : index
    %0 = vector.load %arg1[%c0, %c0_0] : memref<16x16xf32, #tpu.memory_space<vmem>>, vector<16x16xf32>
    %1 = arith.truncf %0 : vector<16x16xf32> to vector<16x16xbf16>
    %c0_1 = arith.constant 0 : index
    %c0_2 = arith.constant 0 : index
    %2 = vector.load %arg2[%c0_1, %c0_2] : memref<16x256xbf16, #tpu.memory_space<vmem>>, vector<16x256xbf16>
    %cst = arith.constant dense<0.000000e+00> : vector<16x256xf32>
    %3 = tpu.matmul %1, %2, %cst {dimension_numbers = #tpu.dot_dimension_numbers<[1], [0], [0], [1], [0, 0, 1, 1], [], []>} : vector<16x16xbf16>, vector<16x256xbf16>, vector<16x256xf32> -> vector<16x256xf32>
    %c0_3 = arith.constant 0 : index
    %c0_4 = arith.constant 0 : index
    %4 = vector.load %arg3[%c0_3, %c0_4] : memref<1x256xf32, #tpu.memory_space<vmem>>, vector<1x256xf32>
    %5 = vector.broadcast %4 : vector<1x256xf32> to vector<16x256xf32>
    %6 = arith.addf %3, %5 : vector<16x256xf32>
    %7 = vector.extract_strided_slice %6 {offsets = [0, 0], sizes = [16, 128], strides = [1, 1]} : vector<16x256xf32> to vector<16x128xf32>
    %c0_5 = arith.constant 0 : index
    %c0_6 = arith.constant 0 : index
    %8 = vector.load %arg9[%c0_5, %c0_6] : memref<16x128xf32, #tpu.memory_space<vmem>>, vector<16x128xf32>
    tpu.vector_store %arg9[%c0_5, %c0_6], %7 {strides = array<i32>} : memref<16x128xf32, #tpu.memory_space<vmem>>, vector<16x128xf32>,
    %9 = vector.extract_strided_slice %6 {offsets = [0, 128], sizes = [16, 128], strides = [1, 1]} : vector<16x256xf32> to vector<16x128xf32>
    %c0_7 = arith.constant 0 : index
    %c0_8 = arith.constant 0 : index
    %10 = vector.load %arg11[%c0_7, %c0_8] : memref<16x128xf32, #tpu.memory_space<vmem>>, vector<16x128xf32>
    tpu.vector_store %arg11[%c0_7, %c0_8], %9 {strides = array<i32>} : memref<16x128xf32, #tpu.memory_space<vmem>>, vector<16x128xf32>,
    %c0_9 = arith.constant 0 : index
    %c0_10 = arith.constant 0 : index
    %11 = memref.load %arg6[%c0_9, %c0_10] : memref<1x1xf32, #tpu.memory_space<smem>>
    %12 = arith.truncf %7 : vector<16x128xf32> to vector<16x128xbf16>
    %c0_11 = arith.constant 0 : index
    %c0_12 = arith.constant 0 : index
    %13 = vector.load %arg4[%c0_11, %c0_12] : memref<128x128xbf16, #tpu.memory_space<vmem>>, vector<128x128xbf16>
    %cst_13 = arith.constant dense<0.000000e+00> : vector<16x128xf32>
    %14 = tpu.matmul %12, %13, %cst_13 {dimension_numbers = #tpu.dot_dimension_numbers<[1], [0], [0], [1], [0, 0, 1, 1], [], []>} : vector<16x128xbf16>, vector<128x128xbf16>, vector<16x128xf32> -> vector<16x128xf32>
    %c0_14 = arith.constant 0 : index
    %c0_15 = arith.constant 0 : index
    %15 = vector.load %arg5[%c0_14, %c0_15] : memref<1x128xf32, #tpu.memory_space<vmem>>, vector<1x128xf32>
    %16 = vector.broadcast %15 : vector<1x128xf32> to vector<16x128xf32>
    %17 = arith.addf %14, %16 : vector<16x128xf32>
    %cst_16 = arith.constant 0.000000e+00 : f32
    %18 = vector.broadcast %cst_16 : f32 to vector<16x128xf32>
    %19 = arith.cmpf oge, %17, %18 : vector<16x128xf32>
    %20 = vector.broadcast %11 : f32 to vector<16x128xf32>
    %21 = arith.mulf %20, %17 : vector<16x128xf32>
    %22 = arith.select %19, %17, %21 : vector<16x128xi1>, vector<16x128xf32>
    %23 = arith.truncf %22 : vector<16x128xf32> to vector<16x128xbf16>
    %c0_17 = arith.constant 0 : index
    %c0_18 = arith.constant 0 : index
    %24 = vector.load %arg7[%c0_17, %c0_18] : memref<128x128xbf16, #tpu.memory_space<vmem>>, vector<128x128xbf16>
    %cst_19 = arith.constant dense<0.000000e+00> : vector<16x128xf32>
    %25 = tpu.matmul %23, %24, %cst_19 {dimension_numbers = #tpu.dot_dimension_numbers<[1], [0], [0], [1], [0, 0, 1, 1], [], []>} : vector<16x128xbf16>, vector<128x128xbf16>, vector<16x128xf32> -> vector<16x128xf32>
    %c0_20 = arith.constant 0 : index
    %c0_21 = arith.constant 0 : index
    %26 = vector.load %arg8[%c0_20, %c0_21] : memref<1x128xf32, #tpu.memory_space<vmem>>, vector<1x128xf32>
    %27 = vector.broadcast %26 : vector<1x128xf32> to vector<16x128xf32>
    %28 = arith.addf %25, %27 : vector<16x128xf32>
    %c0_22 = arith.constant 0 : index
    %c0_23 = arith.constant 0 : index
    %29 = vector.load %arg10[%c0_22, %c0_23] : memref<16x128xf32, #tpu.memory_space<vmem>>, vector<16x128xf32>
    tpu.vector_store %arg10[%c0_22, %c0_23], %28 {strides = array<i32>} : memref<16x128xf32, #tpu.memory_space<vmem>>, vector<16x128xf32>,
    return
  }
  func.func @transform_0(%arg0: i32) -> (i32, i32) {
    %c0_i32 = arith.constant 0 : i32
    %c0_i32_0 = arith.constant 0 : i32
    return %arg0, %c0_i32 : i32, i32
  }
  func.func @transform_1(%arg0: i32) -> (i32, i32) {
    %c0_i32 = arith.constant 0 : i32
    %c0_i32_0 = arith.constant 0 : i32
    %c0_i32_1 = arith.constant 0 : i32
    return %c0_i32, %c0_i32_0 : i32, i32
  }
  func.func @transform_2(%arg0: i32) -> (i32, i32) {
    %c0_i32 = arith.constant 0 : i32
    %c0_i32_0 = arith.constant 0 : i32
    %c0_i32_1 = arith.constant 0 : i32
    return %c0_i32, %c0_i32_0 : i32, i32
  }
  func.func @transform_3(%arg0: i32) -> (i32, i32) {
    %c0_i32 = arith.constant 0 : i32
    %c0_i32_0 = arith.constant 0 : i32
    %c0_i32_1 = arith.constant 0 : i32
    return %c0_i32, %c0_i32_0 : i32, i32
  }
  func.func @transform_4(%arg0: i32) -> (i32, i32) {
    %c0_i32 = arith.constant 0 : i32
    %c0_i32_0 = arith.constant 0 : i32
    %c0_i32_1 = arith.constant 0 : i32
    return %c0_i32, %c0_i32_0 : i32, i32
  }
  func.func @transform_5(%arg0: i32) -> (i32, i32) {
    %c0_i32 = arith.constant 0 : i32
    %c0_i32_0 = arith.constant 0 : i32
    %c0_i32_1 = arith.constant 0 : i32
    return %c0_i32, %c0_i32_0 : i32, i32
  }
  func.func @transform_6(%arg0: i32) -> (i32, i32) {
    %c0_i32 = arith.constant 0 : i32
    %c0_i32_0 = arith.constant 0 : i32
    %c0_i32_1 = arith.constant 0 : i32
    return %c0_i32, %c0_i32_0 : i32, i32
  }
  func.func @transform_7(%arg0: i32) -> (i32, i32) {
    %c0_i32 = arith.constant 0 : i32
    %c0_i32_0 = arith.constant 0 : i32
    %c0_i32_1 = arith.constant 0 : i32
    return %c0_i32, %c0_i32_0 : i32, i32
  }
  func.func @transform_8(%arg0: i32) -> (i32, i32) {
    %c0_i32 = arith.constant 0 : i32
    %c0_i32_0 = arith.constant 0 : i32
    return %arg0, %c0_i32 : i32, i32
  }
  func.func @transform_9(%arg0: i32) -> (i32, i32) {
    %c0_i32 = arith.constant 0 : i32
    %c0_i32_0 = arith.constant 0 : i32
    return %arg0, %c0_i32 : i32, i32
  }
  func.func @transform_10(%arg0: i32) -> (i32, i32) {
    %c0_i32 = arith.constant 0 : i32
    %c0_i32_0 = arith.constant 0 : i32
    return %arg0, %c0_i32 : i32, i32
  }
}

</mosaic_0001>

<llo_original>
// kernel: tpu_custom_call.1
$region0: #{tpu_custom_call.1}
  #allocation0 [shape = 'u32[]', space=smem, size = 0x4, offset = 0x4, fixed_abs, tag = 'smem constant byte address 0x4 - core index']
  #allocation1 [shape = 'u32[72,128]{1,0:T(1,128)}', space=vmem, size = 0x9000, scoped, tag = 'internal scratch']
  #allocation2 [shape = 'f32[1,1]{1,0:T(1,128)S(6)}', space=smem, size = 0x200, scoped, tag = 'scoped memory for tpu_custom_call.1']
  %s0 = inlined_call_operand.hbm [shape: f32[16,16], index: 0, kind: input, shape index: {}]
  %s1 = inlined_call_operand.hbm [shape: bf16[16,256], index: 1, kind: input, shape index: {}]
  %s2 = inlined_call_operand.vmem [shape: f32[1,256], index: 2, kind: input, shape index: {}]
  %s3 = inlined_call_operand.hbm [shape: bf16[128,128], index: 3, kind: input, shape index: {}]
  %s4 = inlined_call_operand.vmem [shape: f32[1,128], index: 4, kind: input, shape index: {}]
  %s5 = inlined_call_operand.<no memory space> [shape: f32[1,1], index: 5, kind: input, shape index: {}]
  %s6 = inlined_call_operand.hbm [shape: bf16[128,128], index: 6, kind: input, shape index: {}]
  %s7 = inlined_call_operand.vmem [shape: f32[1,128], index: 7, kind: input, shape index: {}]
  %s8 = inlined_call_operand.hbm [shape: f32[16,128], index: 8, kind: output, shape index: {0}]
  %s9 = inlined_call_operand.hbm [shape: f32[16,128], index: 9, kind: output, shape index: {1}]
  %s10 = inlined_call_operand.hbm [shape: f32[16,128], index: 10, kind: output, shape index: {2}]
  %11 = xla_tuple %s8, %s9, %s10
  %s12 = sld [smem:[#allocation0]]
  $region74: #{tpu_custom_call.1} parent=0
    _
  %s14 = ssub.s32 1, %s12
  %s15 = scalar_select 0, %s14, %s12
  %16 = sst [smem:[#allocation2]] %s5
  $region1: #{tpu_custom_call.1} parent=0
    #allocation3 [shape = 'u8[8192]{0}', space=vmem, size = 0x2000, scoped, tag = 'input window, operand 0, single buffered']
    #allocation4 [shape = 's32[1]{0}', space=sflag, size = 0x4, scoped, tag = 'scoped memory for tpu_custom_call.1']
    #allocation5 [shape = 's32[1]{0}', space=sflag, size = 0x4, scoped, tag = 'scoped memory for tpu_custom_call.1']
    #allocation6 [shape = 'u8[8192]{0}', space=vmem, size = 0x2000, scoped, tag = 'input window, operand 1, single buffered']
    #allocation7 [shape = 's32[1]{0}', space=sflag, size = 0x4, scoped, tag = 'scoped memory for tpu_custom_call.1']
    #allocation8 [shape = 'u8[32768]{0}', space=vmem, size = 0x8000, scoped, tag = 'input window, operand 3, single buffered']
    #allocation9 [shape = 'u8[32768]{0}', space=vmem, size = 0x8000, scoped, tag = 'input window, operand 6, single buffered']
    #allocation10 [shape = 's32[1]{0}', space=sflag, size = 0x4, scoped, tag = 'scoped memory for tpu_custom_call.1']
    #allocation11 [shape = 'u8[8192]{0}', space=vmem, size = 0x2000, scoped, tag = 'output window, operand 0, single buffered']
    #allocation12 [shape = 'u8[8192]{0}', space=vmem, size = 0x2000, scoped, tag = 'output window, operand 1, single buffered']
    #allocation13 [shape = 's32[1]{0}', space=sflag, size = 0x4, scoped, tag = 'scoped memory for tpu_custom_call.1']
    #allocation14 [shape = 'u8[8192]{0}', space=vmem, size = 0x2000, scoped, tag = 'output window, operand 2, single buffered']
    %17 = vsyncpa [#allocation4], 0
    %18 = vsyncpa [#allocation7], 0
    %19 = vsyncpa [#allocation10], 0
    %20 = vsyncpa [#allocation5], 0
    %21 = vsyncpa [#allocation13], 0
    // Predicated region
    $region2: #{tpu_custom_call.1} parent=1 // pred_check
      _
    $region3: #{tpu_custom_call.1} parent=1 // pred_check_branch
      %23 = sbr.rel (0) target = $region5
    $region4: #{tpu_custom_call.1} parent=1 // pred_region
      %25 = vsyncadd [#allocation4], 0
      %s26 = sshll.u32 %s0, 4
      %s27 = int_to_ptr.hbm [resolvable:$true] %s26
      %s28 = sshll.u32 [#allocation3], 4
      %s29 = int_to_ptr.vmem [resolvable:$true] %s28
      %34 = dma.hbm_to_vmem [thread:$0]  %s27, 256, %s29, [#allocation4], 128, 128, 8
    $region5: #{tpu_custom_call.1} parent=1 // pred_fallthru
      _
    // Predicated region
    $region6: #{tpu_custom_call.1} parent=1 // pred_check
      _
    $region7: #{tpu_custom_call.1} parent=1 // pred_check_branch
      %36 = sbr.rel (0) target = $region9
    $region8: #{tpu_custom_call.1} parent=1 // pred_region
      %38 = vsyncadd [#allocation7], 0
      %s39 = sshll.u32 %s1, 4
      %s40 = int_to_ptr.hbm [resolvable:$true] %s39
      %s41 = sshll.u32 [#allocation6], 4
      %s42 = int_to_ptr.vmem [resolvable:$true] %s41
      %47 = dma.hbm_to_vmem [thread:$0]  %s40, 256, %s42, [#allocation7], 128, 128, 8
    $region9: #{tpu_custom_call.1} parent=1 // pred_fallthru
      _
    // Predicated region
    $region10: #{tpu_custom_call.1} parent=1 // pred_check
      _
    $region11: #{tpu_custom_call.1} parent=1 // pred_check_branch
      %49 = sbr.rel (0) target = $region13
    $region12: #{tpu_custom_call.1} parent=1 // pred_region
      _
    $region13: #{tpu_custom_call.1} parent=1 // pred_fallthru
      _
    // Predicated region
    $region14: #{tpu_custom_call.1} parent=1 // pred_check
      _
    $region15: #{tpu_custom_call.1} parent=1 // pred_check_branch
      %51 = sbr.rel (0) target = $region17
    $region16: #{tpu_custom_call.1} parent=1 // pred_region
      %53 = vsyncadd [#allocation7], 0
      %s54 = sshll.u32 %s3, 4
      %s55 = int_to_ptr.hbm [resolvable:$true] %s54
      %s56 = sshll.u32 [#allocation8], 4
      %s57 = int_to_ptr.vmem [resolvable:$true] %s56
      %62 = dma.hbm_to_vmem [thread:$0]  %s55, 1024, %s57, [#allocation7], 64, 64, 4
    $region17: #{tpu_custom_call.1} parent=1 // pred_fallthru
      _
    // Predicated region
    $region18: #{tpu_custom_call.1} parent=1 // pred_check
      _
    $region19: #{tpu_custom_call.1} parent=1 // pred_check_branch
      %64 = sbr.rel (0) target = $region21
    $region20: #{tpu_custom_call.1} parent=1 // pred_region
      _
    $region21: #{tpu_custom_call.1} parent=1 // pred_fallthru
      _
    // Predicated region
    $region22: #{tpu_custom_call.1} parent=1 // pred_check
      _
    $region23: #{tpu_custom_call.1} parent=1 // pred_check_branch
      %66 = sbr.rel (0) target = $region25
    $region24: #{tpu_custom_call.1} parent=1 // pred_region
      _
    $region25: #{tpu_custom_call.1} parent=1 // pred_fallthru
      _
    // Predicated region
    $region26: #{tpu_custom_call.1} parent=1 // pred_check
      _
    $region27: #{tpu_custom_call.1} parent=1 // pred_check_branch
      %68 = sbr.rel (0) target = $region29
    $region28: #{tpu_custom_call.1} parent=1 // pred_region
      %70 = vsyncadd [#allocation10], 0
      %s71 = sshll.u32 %s6, 4
      %s72 = int_to_ptr.hbm [resolvable:$true] %s71
      %s73 = sshll.u32 [#allocation9], 4
      %s74 = int_to_ptr.vmem [resolvable:$true] %s73
      %79 = dma.hbm_to_vmem [thread:$0]  %s72, 1024, %s74, [#allocation10], 64, 64, 4
    $region29: #{tpu_custom_call.1} parent=1 // pred_fallthru
      _
    // Predicated region
    $region30: #{tpu_custom_call.1} parent=1 // pred_check
      _
    $region31: #{tpu_custom_call.1} parent=1 // pred_check_branch
      %81 = sbr.rel (0) target = $region33
    $region32: #{tpu_custom_call.1} parent=1 // pred_region
      _
    $region33: #{tpu_custom_call.1} parent=1 // pred_fallthru
      _
    // Predicated region
    $region34: #{tpu_custom_call.1} parent=1 // pred_check
      _
    $region35: #{tpu_custom_call.1} parent=1 // pred_check_branch
      %83 = sbr.rel (0) target = $region37
    $region36: #{tpu_custom_call.1} parent=1 // pred_region
      %85 = dma.done [#allocation4], 256
    $region37: #{tpu_custom_call.1} parent=1 // pred_fallthru
      _
    // Predicated region
    $region38: #{tpu_custom_call.1} parent=1 // pred_check
      _
    $region39: #{tpu_custom_call.1} parent=1 // pred_check_branch
      %87 = sbr.rel (0) target = $region41
    $region40: #{tpu_custom_call.1} parent=1 // pred_region
      %89 = dma.done [#allocation7], 256
    $region41: #{tpu_custom_call.1} parent=1 // pred_fallthru
      _
    // Predicated region
    $region42: #{tpu_custom_call.1} parent=1 // pred_check
      _
    $region43: #{tpu_custom_call.1} parent=1 // pred_check_branch
      %91 = sbr.rel (0) target = $region45
    $region44: #{tpu_custom_call.1} parent=1 // pred_region
      %93 = dma.done [#allocation7], 1024
    $region45: #{tpu_custom_call.1} parent=1 // pred_fallthru
      _
    // Predicated region
    $region46: #{tpu_custom_call.1} parent=1 // pred_check
      _
    $region47: #{tpu_custom_call.1} parent=1 // pred_check_branch
      %95 = sbr.rel (0) target = $region49
    $region48: #{tpu_custom_call.1} parent=1 // pred_region
      %97 = dma.done [#allocation10], 1024
    $region49: #{tpu_custom_call.1} parent=1 // pred_fallthru
      _
    %v99 = vld [vmem:[#allocation3] sm:$0xff]
    %v100 = vld [vmem:[#allocation3 + $0x8] sm:$0xff]
    %v101 = vpack.c.bf16 %v100, %v99
    %v102 = vld [vmem:[#allocation6] sm:$0xff]
    %v103 = vld [vmem:[#allocation6 + $0x8] sm:$0xff]
    %v104 = vld [vmem:[%s2] sm:$0x3]
    %v106 = vperm.slane %v104, 0
    %v107 = vperm.slane %v104, 1
    %v112 = vunpack.c.l.b16 %v102
    %v113 = vunpack.c.h.b16 %v102
    %v114 = vunpack.c.l.b16 %v103
    %v115 = vunpack.c.h.b16 %v103
    %v116 = vpack.c.b16 %v114, %v112
    %v117 = vpack.c.b16 %v115, %v113
    %vm120 = vcmask 130048
    %v122 = vsel %vm120, %v101, 0
    %124 = vmatpush.bf16.msra.mxu0 0
    %125 = vmatpush.bf16.msra.mxu0 0
    %126 = vmatpush.bf16.msra.mxu0 0
    %127 = vmatpush.bf16.msra.mxu0 0
    %128 = vmatpush.bf16.msra.mxu0 0
    %129 = vmatpush.bf16.msra.mxu0 0
    %130 = vmatpush.bf16.msra.mxu0 0
    %131 = vmatpush.bf16.msra.mxu0 %v116
    %132 = vmatmul.bf16.gmra.mxu0 %v122
    %v133 = vpop.f32.mrf.mxu0
    %v134 = vadd.f32 %v106, %v133
    %v135 = vpop.f32.mrf.mxu0
    %v136 = vadd.f32 %v106, %v135
    %137 = vdwg.mxu0
    %138 = vmatpush.bf16.msra.mxu0 0
    %139 = vmatpush.bf16.msra.mxu0 0
    %140 = vmatpush.bf16.msra.mxu0 0
    %141 = vmatpush.bf16.msra.mxu0 0
    %142 = vmatpush.bf16.msra.mxu0 0
    %143 = vmatpush.bf16.msra.mxu0 0
    %144 = vmatpush.bf16.msra.mxu0 0
    %145 = vmatpush.bf16.msra.mxu0 %v117
    %146 = vmatmul.bf16.gmra.mxu0 %v122
    %v147 = vpop.f32.mrf.mxu0
    %v148 = vadd.f32 %v107, %v147
    %v149 = vpop.f32.mrf.mxu0
    %v150 = vadd.f32 %v107, %v149
    %151 = vdwg.mxu0
    %152 = vst [vmem:[#allocation11] sm:$0xff] %v134
    %153 = vst [vmem:[#allocation11 + $0x8] sm:$0xff] %v136
    %154 = vst [vmem:[#allocation14] sm:$0xff] %v148
    %155 = vst [vmem:[#allocation14 + $0x8] sm:$0xff] %v150
    %s156 = sld [smem:[#allocation2]]
    %v157 = vpack.c.bf16 %v136, %v134
    %v158 = vld [vmem:[#allocation8] sm:$0xf]
    %v159 = vld [vmem:[#allocation8 + $0x4] sm:$0xf]
    %v160 = vld [vmem:[#allocation8 + $0x8] sm:$0xf]
    %v161 = vld [vmem:[#allocation8 + $0xc] sm:$0xf]
    %v162 = vld [vmem:[#allocation8 + $0x10] sm:$0xf]
    %v163 = vld [vmem:[#allocation8 + $0x14] sm:$0xf]
    %v164 = vld [vmem:[#allocation8 + $0x18] sm:$0xf]
    %v165 = vld [vmem:[#allocation8 + $0x1c] sm:$0xf]
    %v166 = vld [vmem:[#allocation8 + $0x20] sm:$0xf]
    %v167 = vld [vmem:[#allocation8 + $0x24] sm:$0xf]
    %v168 = vld [vmem:[#allocation8 + $0x28] sm:$0xf]
    %v169 = vld [vmem:[#allocation8 + $0x2c] sm:$0xf]
    %v170 = vld [vmem:[#allocation8 + $0x30] sm:$0xf]
    %v171 = vld [vmem:[#allocation8 + $0x34] sm:$0xf]
    %v172 = vld [vmem:[#allocation8 + $0x38] sm:$0xf]
    %v173 = vld [vmem:[#allocation8 + $0x3c] sm:$0xf]
    %v174 = vld [vmem:[%s4] sm:$0x1]
    %v176 = vperm.slane %v174, 0
    %v194 = vunpack.c.l.b16 %v158
    %v195 = vunpack.c.l.b16 %v159
    %v196 = vunpack.c.l.b16 %v160
    %v197 = vunpack.c.l.b16 %v161
    %v198 = vunpack.c.l.b16 %v162
    %v199 = vunpack.c.l.b16 %v163
    %v200 = vunpack.c.l.b16 %v164
    %v201 = vunpack.c.l.b16 %v165
    %v202 = vunpack.c.l.b16 %v166
    %v203 = vunpack.c.l.b16 %v167
    %v204 = vunpack.c.l.b16 %v168
    %v205 = vunpack.c.l.b16 %v169
    %v206 = vunpack.c.l.b16 %v170
    %v207 = vunpack.c.l.b16 %v171
    %v208 = vunpack.c.l.b16 %v172
    %v209 = vunpack.c.l.b16 %v173
    %v210 = vpack.c.b16 %v195, %v194
    %v211 = vpack.c.b16 %v197, %v196
    %v212 = vpack.c.b16 %v199, %v198
    %v213 = vpack.c.b16 %v201, %v200
    %v214 = vpack.c.b16 %v203, %v202
    %v215 = vpack.c.b16 %v205, %v204
    %v216 = vpack.c.b16 %v207, %v206
    %v217 = vpack.c.b16 %v209, %v208
    %226 = vmatpush.bf16.msra.mxu0 %v217
    %227 = vmatpush.bf16.msra.mxu0 %v216
    %228 = vmatpush.bf16.msra.mxu0 %v215
    %229 = vmatpush.bf16.msra.mxu0 %v214
    %230 = vmatpush.bf16.msra.mxu0 %v213
    %231 = vmatpush.bf16.msra.mxu0 %v212
    %232 = vmatpush.bf16.msra.mxu0 %v211
    %233 = vmatpush.bf16.msra.mxu0 %v210
    %234 = vmatmul.bf16.gmra.mxu0 %v157
    %v235 = vpop.f32.mrf.mxu0
    %v236 = vadd.f32 %v176, %v235
    %v237 = vpop.f32.mrf.mxu0
    %v238 = vadd.f32 %v176, %v237
    %239 = vdwg.mxu0
    %vm240 = vcmp.ge.f32.partialorder %v236, 0.0
    %vm241 = vcmp.ge.f32.partialorder %v238, 0.0
    %v242 = vstv %s156
    %v243 = vmul.f32 %v242, %v236
    %v244 = vmul.f32 %v242, %v238
    %v245 = vsel %vm240, %v236, %v243
    %v246 = vsel %vm241, %v238, %v244
    %v247 = vpack.c.bf16 %v246, %v245
    %v248 = vld [vmem:[#allocation9] sm:$0xf]
    %v249 = vld [vmem:[#allocation9 + $0x4] sm:$0xf]
    %v250 = vld [vmem:[#allocation9 + $0x8] sm:$0xf]
    %v251 = vld [vmem:[#allocation9 + $0xc] sm:$0xf]
    %v252 = vld [vmem:[#allocation9 + $0x10] sm:$0xf]
    %v253 = vld [vmem:[#allocation9 + $0x14] sm:$0xf]
    %v254 = vld [vmem:[#allocation9 + $0x18] sm:$0xf]
    %v255 = vld [vmem:[#allocation9 + $0x1c] sm:$0xf]
    %v256 = vld [vmem:[#allocation9 + $0x20] sm:$0xf]
    %v257 = vld [vmem:[#allocation9 + $0x24] sm:$0xf]
    %v258 = vld [vmem:[#allocation9 + $0x28] sm:$0xf]
    %v259 = vld [vmem:[#allocation9 + $0x2c] sm:$0xf]
    %v260 = vld [vmem:[#allocation9 + $0x30] sm:$0xf]
    %v261 = vld [vmem:[#allocation9 + $0x34] sm:$0xf]
    %v262 = vld [vmem:[#allocation9 + $0x38] sm:$0xf]
    %v263 = vld [vmem:[#allocation9 + $0x3c] sm:$0xf]
    %v264 = vld [vmem:[%s7] sm:$0x1]
    %v266 = vperm.slane %v264, 0
    %v284 = vunpack.c.l.b16 %v248
    %v285 = vunpack.c.l.b16 %v249
    %v286 = vunpack.c.l.b16 %v250
    %v287 = vunpack.c.l.b16 %v251
    %v288 = vunpack.c.l.b16 %v252
    %v289 = vunpack.c.l.b16 %v253
    %v290 = vunpack.c.l.b16 %v254
    %v291 = vunpack.c.l.b16 %v255
    %v292 = vunpack.c.l.b16 %v256
    %v293 = vunpack.c.l.b16 %v257
    %v294 = vunpack.c.l.b16 %v258
    %v295 = vunpack.c.l.b16 %v259
    %v296 = vunpack.c.l.b16 %v260
    %v297 = vunpack.c.l.b16 %v261
    %v298 = vunpack.c.l.b16 %v262
    %v299 = vunpack.c.l.b16 %v263
    %v300 = vpack.c.b16 %v285, %v284
    %v301 = vpack.c.b16 %v287, %v286
    %v302 = vpack.c.b16 %v289, %v288
    %v303 = vpack.c.b16 %v291, %v290
    %v304 = vpack.c.b16 %v293, %v292
    %v305 = vpack.c.b16 %v295, %v294
    %v306 = vpack.c.b16 %v297, %v296
    %v307 = vpack.c.b16 %v299, %v298
    %316 = vmatpush.bf16.msra.mxu0 %v307
    %317 = vmatpush.bf16.msra.mxu0 %v306
    %318 = vmatpush.bf16.msra.mxu0 %v305
    %319 = vmatpush.bf16.msra.mxu0 %v304
    %320 = vmatpush.bf16.msra.mxu0 %v303
    %321 = vmatpush.bf16.msra.mxu0 %v302
    %322 = vmatpush.bf16.msra.mxu0 %v301
    %323 = vmatpush.bf16.msra.mxu0 %v300
    %324 = vmatmul.bf16.gmra.mxu0 %v247
    %v325 = vpop.f32.mrf.mxu0
    %v326 = vadd.f32 %v266, %v325
    %v327 = vpop.f32.mrf.mxu0
    %v328 = vadd.f32 %v266, %v327
    %329 = vdwg.mxu0
    %330 = vst [vmem:[#allocation12] sm:$0xff] %v326
    %331 = vst [vmem:[#allocation12 + $0x8] sm:$0xff] %v328
    // Predicated region
    $region50: #{tpu_custom_call.1} parent=1 // pred_check
      _
    $region51: #{tpu_custom_call.1} parent=1 // pred_check_branch
      %333 = sbr.rel (0) target = $region53
    $region52: #{tpu_custom_call.1} parent=1 // pred_region
      %335 = vsyncadd [#allocation5], 0
      %s336 = sshll.u32 [#allocation11], 4
      %s337 = int_to_ptr.vmem [resolvable:$true] %s336
      %s338 = sshll.u32 %s8, 4
      %s339 = int_to_ptr.hbm [resolvable:$true] %s338
      %344 = dma.vmem_to_hbm [thread:$0]  %s337, 256, %s339, [#allocation5], 128, 128, 8
    $region53: #{tpu_custom_call.1} parent=1 // pred_fallthru
      _
    // Predicated region
    $region54: #{tpu_custom_call.1} parent=1 // pred_check
      _
    $region55: #{tpu_custom_call.1} parent=1 // pred_check_branch
      %346 = sbr.rel (0) target = $region57
    $region56: #{tpu_custom_call.1} parent=1 // pred_region
      %348 = vsyncadd [#allocation13], 0
      %s349 = sshll.u32 [#allocation12], 4
      %s350 = int_to_ptr.vmem [resolvable:$true] %s349
      %s351 = sshll.u32 %s9, 4
      %s352 = int_to_ptr.hbm [resolvable:$true] %s351
      %357 = dma.vmem_to_hbm [thread:$0]  %s350, 256, %s352, [#allocation13], 128, 128, 8
    $region57: #{tpu_custom_call.1} parent=1 // pred_fallthru
      _
    // Predicated region
    $region58: #{tpu_custom_call.1} parent=1 // pred_check
      _
    $region59: #{tpu_custom_call.1} parent=1 // pred_check_branch
      %359 = sbr.rel (0) target = $region61
    $region60: #{tpu_custom_call.1} parent=1 // pred_region
      %361 = vsyncadd [#allocation13], 0
      %s362 = sshll.u32 [#allocation14], 4
      %s363 = int_to_ptr.vmem [resolvable:$true] %s362
      %s364 = sshll.u32 %s10, 4
      %s365 = int_to_ptr.hbm [resolvable:$true] %s364
      %370 = dma.vmem_to_hbm [thread:$0]  %s363, 256, %s365, [#allocation13], 128, 128, 8
    $region61: #{tpu_custom_call.1} parent=1 // pred_fallthru
      _
    // Predicated region
    $region62: #{tpu_custom_call.1} parent=1 // pred_check
      _
    $region63: #{tpu_custom_call.1} parent=1 // pred_check_branch
      %372 = sbr.rel (0) target = $region65
    $region64: #{tpu_custom_call.1} parent=1 // pred_region
      %374 = dma.done [#allocation5], 256
    $region65: #{tpu_custom_call.1} parent=1 // pred_fallthru
      _
    // Predicated region
    $region66: #{tpu_custom_call.1} parent=1 // pred_check
      _
    $region67: #{tpu_custom_call.1} parent=1 // pred_check_branch
      %376 = sbr.rel (0) target = $region69
    $region68: #{tpu_custom_call.1} parent=1 // pred_region
      %378 = dma.done [#allocation13], 256
    $region69: #{tpu_custom_call.1} parent=1 // pred_fallthru
      _
    // Predicated region
    $region70: #{tpu_custom_call.1} parent=1 // pred_check
      _
    $region71: #{tpu_custom_call.1} parent=1 // pred_check_branch
      %380 = sbr.rel (0) target = $region73
    $region72: #{tpu_custom_call.1} parent=1 // pred_region
      %382 = dma.done [#allocation13], 256
    $region73: #{tpu_custom_call.1} parent=1 // pred_fallthru
      _
    %383 = vsyncpa [#allocation4], 1
    %384 = vsyncpa [#allocation7], 1
    %385 = vsyncpa [#allocation10], 1
    %386 = vsyncpa [#allocation5], 1
    %387 = vsyncpa [#allocation13], 1

// kernel: tpu_custom_call.1
$region0: #{tpu_custom_call.1}
  #allocation0 [shape = 'u32[]', space=smem, size = 0x4, offset = 0x4, fixed_abs, tag = 'smem constant byte address 0x4 - core index']
  #allocation1 [shape = 'u32[72,128]{1,0:T(1,128)}', space=vmem, size = 0x9000, scoped, tag = 'internal scratch']
  #allocation2 [shape = 'f32[1,1]{1,0:T(1,128)S(6)}', space=smem, size = 0x200, scoped, tag = 'scoped memory for tpu_custom_call.1']
  %s0 = inlined_call_operand.hbm [shape: f32[16,16], index: 0, kind: input, shape index: {}]
  %s1 = inlined_call_operand.hbm [shape: bf16[16,256], index: 1, kind: input, shape index: {}]
  %s2 = inlined_call_operand.vmem [shape: f32[1,256], index: 2, kind: input, shape index: {}]
  %s3 = inlined_call_operand.hbm [shape: bf16[128,128], index: 3, kind: input, shape index: {}]
  %s4 = inlined_call_operand.vmem [shape: f32[1,128], index: 4, kind: input, shape index: {}]
  %s5 = inlined_call_operand.<no memory space> [shape: f32[1,1], index: 5, kind: input, shape index: {}]
  %s6 = inlined_call_operand.hbm [shape: bf16[128,128], index: 6, kind: input, shape index: {}]
  %s7 = inlined_call_operand.vmem [shape: f32[1,128], index: 7, kind: input, shape index: {}]
  %s8 = inlined_call_operand.hbm [shape: f32[16,128], index: 8, kind: output, shape index: {0}]
  %s9 = inlined_call_operand.hbm [shape: f32[16,128], index: 9, kind: output, shape index: {1}]
  %s10 = inlined_call_operand.hbm [shape: f32[16,128], index: 10, kind: output, shape index: {2}]
  %11 = xla_tuple %s8, %s9, %s10
  %s12 = sld [smem:[#allocation0]]
  $region74: #{tpu_custom_call.1} parent=0
    _
  %s14 = ssub.s32 1, %s12
  %s15 = scalar_select 0, %s14, %s12
  %16 = sst [smem:[#allocation2]] %s5
  $region1: #{tpu_custom_call.1} parent=0
    #allocation3 [shape = 'u8[8192]{0}', space=vmem, size = 0x2000, scoped, tag = 'input window, operand 0, single buffered']
    #allocation4 [shape = 's32[1]{0}', space=sflag, size = 0x4, scoped, tag = 'scoped memory for tpu_custom_call.1']
    #allocation5 [shape = 's32[1]{0}', space=sflag, size = 0x4, scoped, tag = 'scoped memory for tpu_custom_call.1']
    #allocation6 [shape = 'u8[8192]{0}', space=vmem, size = 0x2000, scoped, tag = 'input window, operand 1, single buffered']
    #allocation7 [shape = 's32[1]{0}', space=sflag, size = 0x4, scoped, tag = 'scoped memory for tpu_custom_call.1']
    #allocation8 [shape = 'u8[32768]{0}', space=vmem, size = 0x8000, scoped, tag = 'input window, operand 3, single buffered']
    #allocation9 [shape = 'u8[32768]{0}', space=vmem, size = 0x8000, scoped, tag = 'input window, operand 6, single buffered']
    #allocation10 [shape = 's32[1]{0}', space=sflag, size = 0x4, scoped, tag = 'scoped memory for tpu_custom_call.1']
    #allocation11 [shape = 'u8[8192]{0}', space=vmem, size = 0x2000, scoped, tag = 'output window, operand 0, single buffered']
    #allocation12 [shape = 'u8[8192]{0}', space=vmem, size = 0x2000, scoped, tag = 'output window, operand 1, single buffered']
    #allocation13 [shape = 's32[1]{0}', space=sflag, size = 0x4, scoped, tag = 'scoped memory for tpu_custom_call.1']
    #allocation14 [shape = 'u8[8192]{0}', space=vmem, size = 0x2000, scoped, tag = 'output window, operand 2, single buffered']
    %17 = vsyncpa [#allocation4], 0
    %18 = vsyncpa [#allocation7], 0
    %19 = vsyncpa [#allocation10], 0
    %20 = vsyncpa [#allocation5], 0
    %21 = vsyncpa [#allocation13], 0
    // Predicated region
    $region2: #{tpu_custom_call.1} parent=1 // pred_check
      _
    $region3: #{tpu_custom_call.1} parent=1 // pred_check_branch
      %23 = sbr.rel (0) target = $region5
    $region4: #{tpu_custom_call.1} parent=1 // pred_region
      %25 = vsyncadd [#allocation4], 0
      %s26 = sshll.u32 %s0, 4
      %s27 = int_to_ptr.hbm [resolvable:$true] %s26
      %s28 = sshll.u32 [#allocation3], 4
      %s29 = int_to_ptr.vmem [resolvable:$true] %s28
      %34 = dma.hbm_to_vmem [thread:$0]  %s27, 256, %s29, [#allocation4], 128, 128, 8
    $region5: #{tpu_custom_call.1} parent=1 // pred_fallthru
      _
    // Predicated region
    $region6: #{tpu_custom_call.1} parent=1 // pred_check
      _
    $region7: #{tpu_custom_call.1} parent=1 // pred_check_branch
      %36 = sbr.rel (0) target = $region9
    $region8: #{tpu_custom_call.1} parent=1 // pred_region
      %38 = vsyncadd [#allocation7], 0
      %s39 = sshll.u32 %s1, 4
      %s40 = int_to_ptr.hbm [resolvable:$true] %s39
      %s41 = sshll.u32 [#allocation6], 4
      %s42 = int_to_ptr.vmem [resolvable:$true] %s41
      %47 = dma.hbm_to_vmem [thread:$0]  %s40, 256, %s42, [#allocation7], 128, 128, 8
    $region9: #{tpu_custom_call.1} parent=1 // pred_fallthru
      _
    // Predicated region
    $region10: #{tpu_custom_call.1} parent=1 // pred_check
      _
    $region11: #{tpu_custom_call.1} parent=1 // pred_check_branch
      %49 = sbr.rel (0) target = $region13
    $region12: #{tpu_custom_call.1} parent=1 // pred_region
      _
    $region13: #{tpu_custom_call.1} parent=1 // pred_fallthru
      _
    // Predicated region
    $region14: #{tpu_custom_call.1} parent=1 // pred_check
      _
    $region15: #{tpu_custom_call.1} parent=1 // pred_check_branch
      %51 = sbr.rel (0) target = $region17
    $region16: #{tpu_custom_call.1} parent=1 // pred_region
      %53 = vsyncadd [#allocation7], 0
      %s54 = sshll.u32 %s3, 4
      %s55 = int_to_ptr.hbm [resolvable:$true] %s54
      %s56 = sshll.u32 [#allocation8], 4
      %s57 = int_to_ptr.vmem [resolvable:$true] %s56
      %62 = dma.hbm_to_vmem [thread:$0]  %s55, 1024, %s57, [#allocation7], 64, 64, 4
    $region17: #{tpu_custom_call.1} parent=1 // pred_fallthru
      _
    // Predicated region
    $region18: #{tpu_custom_call.1} parent=1 // pred_check
      _
    $region19: #{tpu_custom_call.1} parent=1 // pred_check_branch
      %64 = sbr.rel (0) target = $region21
    $region20: #{tpu_custom_call.1} parent=1 // pred_region
      _
    $region21: #{tpu_custom_call.1} parent=1 // pred_fallthru
      _
    // Predicated region
    $region22: #{tpu_custom_call.1} parent=1 // pred_check
      _
    $region23: #{tpu_custom_call.1} parent=1 // pred_check_branch
      %66 = sbr.rel (0) target = $region25
    $region24: #{tpu_custom_call.1} parent=1 // pred_region
      _
    $region25: #{tpu_custom_call.1} parent=1 // pred_fallthru
      _
    // Predicated region
    $region26: #{tpu_custom_call.1} parent=1 // pred_check
      _
    $region27: #{tpu_custom_call.1} parent=1 // pred_check_branch
      %68 = sbr.rel (0) target = $region29
    $region28: #{tpu_custom_call.1} parent=1 // pred_region
      %70 = vsyncadd [#allocation10], 0
      %s71 = sshll.u32 %s6, 4
      %s72 = int_to_ptr.hbm [resolvable:$true] %s71
      %s73 = sshll.u32 [#allocation9], 4
      %s74 = int_to_ptr.vmem [resolvable:$true] %s73
      %79 = dma.hbm_to_vmem [thread:$0]  %s72, 1024, %s74, [#allocation10], 64, 64, 4
    $region29: #{tpu_custom_call.1} parent=1 // pred_fallthru
      _
    // Predicated region
    $region30: #{tpu_custom_call.1} parent=1 // pred_check
      _
    $region31: #{tpu_custom_call.1} parent=1 // pred_check_branch
      %81 = sbr.rel (0) target = $region33
    $region32: #{tpu_custom_call.1} parent=1 // pred_region
      _
    $region33: #{tpu_custom_call.1} parent=1 // pred_fallthru
      _
    // Predicated region
    $region34: #{tpu_custom_call.1} parent=1 // pred_check
      _
    $region35: #{tpu_custom_call.1} parent=1 // pred_check_branch
      %83 = sbr.rel (0) target = $region37
    $region36: #{tpu_custom_call.1} parent=1 // pred_region
      %85 = dma.done [#allocation4], 256
    $region37: #{tpu_custom_call.1} parent=1 // pred_fallthru
      _
    // Predicated region
    $region38: #{tpu_custom_call.1} parent=1 // pred_check
      _
    $region39: #{tpu_custom_call.1} parent=1 // pred_check_branch
      %87 = sbr.rel (0) target = $region41
    $region40: #{tpu_custom_call.1} parent=1 // pred_region
      %89 = dma.done [#allocation7], 256
    $region41: #{tpu_custom_call.1} parent=1 // pred_fallthru
      _
    // Predicated region
    $region42: #{tpu_custom_call.1} parent=1 // pred_check
      _
    $region43: #{tpu_custom_call.1} parent=1 // pred_check_branch
      %91 = sbr.rel (0) target = $region45
    $region44: #{tpu_custom_call.1} parent=1 // pred_region
      %93 = dma.done [#allocation7], 1024
    $region45: #{tpu_custom_call.1} parent=1 // pred_fallthru
      _
    // Predicated region
    $region46: #{tpu_custom_call.1} parent=1 // pred_check
      _
    $region47: #{tpu_custom_call.1} parent=1 // pred_check_branch
      %95 = sbr.rel (0) target = $region49
    $region48: #{tpu_custom_call.1} parent=1 // pred_region
      %97 = dma.done [#allocation10], 1024
    $region49: #{tpu_custom_call.1} parent=1 // pred_fallthru
      _
    %v99 = vld [vmem:[#allocation3] sm:$0xff]
    %v100 = vld [vmem:[#allocation3 + $0x8] sm:$0xff]
    %v101 = vpack.c.bf16 %v100, %v99
    %v102 = vld [vmem:[#allocation6] sm:$0xff]
    %v103 = vld [vmem:[#allocation6 + $0x8] sm:$0xff]
    %v104 = vld [vmem:[%s2] sm:$0x3]
    %v106 = vperm.slane %v104, 0
    %v107 = vperm.slane %v104, 1
    %v112 = vunpack.c.l.b16 %v102
    %v113 = vunpack.c.h.b16 %v102
    %v114 = vunpack.c.l.b16 %v103
    %v115 = vunpack.c.h.b16 %v103
    %v116 = vpack.c.b16 %v114, %v112
    %v117 = vpack.c.b16 %v115, %v113
    %vm120 = vcmask 130048
    %v122 = vsel %vm120, %v101, 0
    %124 = vmatpush.bf16.msra.mxu0 0
    %125 = vmatpush.bf16.msra.mxu0 0
    %126 = vmatpush.bf16.msra.mxu0 0
    %127 = vmatpush.bf16.msra.mxu0 0
    %128 = vmatpush.bf16.msra.mxu0 0
    %129 = vmatpush.bf16.msra.mxu0 0
    %130 = vmatpush.bf16.msra.mxu0 0
    %131 = vmatpush.bf16.msra.mxu0 %v116
    %132 = vmatmul.bf16.gmra.mxu0 %v122
    %v133 = vpop.f32.mrf.mxu0
    %v134 = vadd.f32 %v106, %v133
    %v135 = vpop.f32.mrf.mxu0
    %v136 = vadd.f32 %v106, %v135
    %137 = vdwg.mxu0
    %138 = vmatpush.bf16.msra.mxu0 0
    %139 = vmatpush.bf16.msra.mxu0 0
    %140 = vmatpush.bf16.msra.mxu0 0
    %141 = vmatpush.bf16.msra.mxu0 0
    %142 = vmatpush.bf16.msra.mxu0 0
    %143 = vmatpush.bf16.msra.mxu0 0
    %144 = vmatpush.bf16.msra.mxu0 0
    %145 = vmatpush.bf16.msra.mxu0 %v117
    %146 = vmatmul.bf16.gmra.mxu0 %v122
    %v147 = vpop.f32.mrf.mxu0
    %v148 = vadd.f32 %v107, %v147
    %v149 = vpop.f32.mrf.mxu0
    %v150 = vadd.f32 %v107, %v149
    %151 = vdwg.mxu0
    %152 = vst [vmem:[#allocation11] sm:$0xff] %v134
    %153 = vst [vmem:[#allocation11 + $0x8] sm:$0xff] %v136
    %154 = vst [vmem:[#allocation14] sm:$0xff] %v148
    %155 = vst [vmem:[#allocation14 + $0x8] sm:$0xff] %v150
    %s156 = sld [smem:[#allocation2]]
    %v157 = vpack.c.bf16 %v136, %v134
    %v158 = vld [vmem:[#allocation8] sm:$0xf]
    %v159 = vld [vmem:[#allocation8 + $0x4] sm:$0xf]
    %v160 = vld [vmem:[#allocation8 + $0x8] sm:$0xf]
    %v161 = vld [vmem:[#allocation8 + $0xc] sm:$0xf]
    %v162 = vld [vmem:[#allocation8 + $0x10] sm:$0xf]
    %v163 = vld [vmem:[#allocation8 + $0x14] sm:$0xf]
    %v164 = vld [vmem:[#allocation8 + $0x18] sm:$0xf]
    %v165 = vld [vmem:[#allocation8 + $0x1c] sm:$0xf]
    %v166 = vld [vmem:[#allocation8 + $0x20] sm:$0xf]
    %v167 = vld [vmem:[#allocation8 + $0x24] sm:$0xf]
    %v168 = vld [vmem:[#allocation8 + $0x28] sm:$0xf]
    %v169 = vld [vmem:[#allocation8 + $0x2c] sm:$0xf]
    %v170 = vld [vmem:[#allocation8 + $0x30] sm:$0xf]
    %v171 = vld [vmem:[#allocation8 + $0x34] sm:$0xf]
    %v172 = vld [vmem:[#allocation8 + $0x38] sm:$0xf]
    %v173 = vld [vmem:[#allocation8 + $0x3c] sm:$0xf]
    %v174 = vld [vmem:[%s4] sm:$0x1]
    %v176 = vperm.slane %v174, 0
    %v194 = vunpack.c.l.b16 %v158
    %v195 = vunpack.c.l.b16 %v159
    %v196 = vunpack.c.l.b16 %v160
    %v197 = vunpack.c.l.b16 %v161
    %v198 = vunpack.c.l.b16 %v162
    %v199 = vunpack.c.l.b16 %v163
    %v200 = vunpack.c.l.b16 %v164
    %v201 = vunpack.c.l.b16 %v165
    %v202 = vunpack.c.l.b16 %v166
    %v203 = vunpack.c.l.b16 %v167
    %v204 = vunpack.c.l.b16 %v168
    %v205 = vunpack.c.l.b16 %v169
    %v206 = vunpack.c.l.b16 %v170
    %v207 = vunpack.c.l.b16 %v171
    %v208 = vunpack.c.l.b16 %v172
    %v209 = vunpack.c.l.b16 %v173
    %v210 = vpack.c.b16 %v195, %v194
    %v211 = vpack.c.b16 %v197, %v196
    %v212 = vpack.c.b16 %v199, %v198
    %v213 = vpack.c.b16 %v201, %v200
    %v214 = vpack.c.b16 %v203, %v202
    %v215 = vpack.c.b16 %v205, %v204
    %v216 = vpack.c.b16 %v207, %v206
    %v217 = vpack.c.b16 %v209, %v208
    %226 = vmatpush.bf16.msra.mxu0 %v217
    %227 = vmatpush.bf16.msra.mxu0 %v216
    %228 = vmatpush.bf16.msra.mxu0 %v215
    %229 = vmatpush.bf16.msra.mxu0 %v214
    %230 = vmatpush.bf16.msra.mxu0 %v213
    %231 = vmatpush.bf16.msra.mxu0 %v212
    %232 = vmatpush.bf16.msra.mxu0 %v211
    %233 = vmatpush.bf16.msra.mxu0 %v210
    %234 = vmatmul.bf16.gmra.mxu0 %v157
    %v235 = vpop.f32.mrf.mxu0
    %v236 = vadd.f32 %v176, %v235
    %v237 = vpop.f32.mrf.mxu0
    %v238 = vadd.f32 %v176, %v237
    %239 = vdwg.mxu0
    %vm240 = vcmp.ge.f32.partialorder %v236, 0.0
    %vm241 = vcmp.ge.f32.partialorder %v238, 0.0
    %v242 = vstv %s156
    %v243 = vmul.f32 %v242, %v236
    %v244 = vmul.f32 %v242, %v238
    %v245 = vsel %vm240, %v236, %v243
    %v246 = vsel %vm241, %v238, %v244
    %v247 = vpack.c.bf16 %v246, %v245
    %v248 = vld [vmem:[#allocation9] sm:$0xf]
    %v249 = vld [vmem:[#allocation9 + $0x4] sm:$0xf]
    %v250 = vld [vmem:[#allocation9 + $0x8] sm:$0xf]
    %v251 = vld [vmem:[#allocation9 + $0xc] sm:$0xf]
    %v252 = vld [vmem:[#allocation9 + $0x10] sm:$0xf]
    %v253 = vld [vmem:[#allocation9 + $0x14] sm:$0xf]
    %v254 = vld [vmem:[#allocation9 + $0x18] sm:$0xf]
    %v255 = vld [vmem:[#allocation9 + $0x1c] sm:$0xf]
    %v256 = vld [vmem:[#allocation9 + $0x20] sm:$0xf]
    %v257 = vld [vmem:[#allocation9 + $0x24] sm:$0xf]
    %v258 = vld [vmem:[#allocation9 + $0x28] sm:$0xf]
    %v259 = vld [vmem:[#allocation9 + $0x2c] sm:$0xf]
    %v260 = vld [vmem:[#allocation9 + $0x30] sm:$0xf]
    %v261 = vld [vmem:[#allocation9 + $0x34] sm:$0xf]
    %v262 = vld [vmem:[#allocation9 + $0x38] sm:$0xf]
    %v263 = vld [vmem:[#allocation9 + $0x3c] sm:$0xf]
    %v264 = vld [vmem:[%s7] sm:$0x1]
    %v266 = vperm.slane %v264, 0
    %v284 = vunpack.c.l.b16 %v248
    %v285 = vunpack.c.l.b16 %v249
    %v286 = vunpack.c.l.b16 %v250
    %v287 = vunpack.c.l.b16 %v251
    %v288 = vunpack.c.l.b16 %v252
    %v289 = vunpack.c.l.b16 %v253
    %v290 = vunpack.c.l.b16 %v254
    %v291 = vunpack.c.l.b16 %v255
    %v292 = vunpack.c.l.b16 %v256
    %v293 = vunpack.c.l.b16 %v257
    %v294 = vunpack.c.l.b16 %v258
    %v295 = vunpack.c.l.b16 %v259
    %v296 = vunpack.c.l.b16 %v260
    %v297 = vunpack.c.l.b16 %v261
    %v298 = vunpack.c.l.b16 %v262
    %v299 = vunpack.c.l.b16 %v263
    %v300 = vpack.c.b16 %v285, %v284
    %v301 = vpack.c.b16 %v287, %v286
    %v302 = vpack.c.b16 %v289, %v288
    %v303 = vpack.c.b16 %v291, %v290
    %v304 = vpack.c.b16 %v293, %v292
    %v305 = vpack.c.b16 %v295, %v294
    %v306 = vpack.c.b16 %v297, %v296
    %v307 = vpack.c.b16 %v299, %v298
    %316 = vmatpush.bf16.msra.mxu0 %v307
    %317 = vmatpush.bf16.msra.mxu0 %v306
    %318 = vmatpush.bf16.msra.mxu0 %v305
    %319 = vmatpush.bf16.msra.mxu0 %v304
    %320 = vmatpush.bf16.msra.mxu0 %v303
    %321 = vmatpush.bf16.msra.mxu0 %v302
    %322 = vmatpush.bf16.msra.mxu0 %v301
    %323 = vmatpush.bf16.msra.mxu0 %v300
    %324 = vmatmul.bf16.gmra.mxu0 %v247
    %v325 = vpop.f32.mrf.mxu0
    %v326 = vadd.f32 %v266, %v325
    %v327 = vpop.f32.mrf.mxu0
    %v328 = vadd.f32 %v266, %v327
    %329 = vdwg.mxu0
    %330 = vst [vmem:[#allocation12] sm:$0xff] %v326
    %331 = vst [vmem:[#allocation12 + $0x8] sm:$0xff] %v328
    // Predicated region
    $region50: #{tpu_custom_call.1} parent=1 // pred_check
      _
    $region51: #{tpu_custom_call.1} parent=1 // pred_check_branch
      %333 = sbr.rel (0) target = $region53
    $region52: #{tpu_custom_call.1} parent=1 // pred_region
      %335 = vsyncadd [#allocation5], 0
      %s336 = sshll.u32 [#allocation11], 4
      %s337 = int_to_ptr.vmem [resolvable:$true] %s336
      %s338 = sshll.u32 %s8, 4
      %s339 = int_to_ptr.hbm [resolvable:$true] %s338
      %344 = dma.vmem_to_hbm [thread:$0]  %s337, 256, %s339, [#allocation5], 128, 128, 8
    $region53: #{tpu_custom_call.1} parent=1 // pred_fallthru
      _
    // Predicated region
    $region54: #{tpu_custom_call.1} parent=1 // pred_check
      _
    $region55: #{tpu_custom_call.1} parent=1 // pred_check_branch
      %346 = sbr.rel (0) target = $region57
    $region56: #{tpu_custom_call.1} parent=1 // pred_region
      %348 = vsyncadd [#allocation13], 0
      %s349 = sshll.u32 [#allocation12], 4
      %s350 = int_to_ptr.vmem [resolvable:$true] %s349
      %s351 = sshll.u32 %s9, 4
      %s352 = int_to_ptr.hbm [resolvable:$true] %s351
      %357 = dma.vmem_to_hbm [thread:$0]  %s350, 256, %s352, [#allocation13], 128, 128, 8
    $region57: #{tpu_custom_call.1} parent=1 // pred_fallthru
      _
    // Predicated region
    $region58: #{tpu_custom_call.1} parent=1 // pred_check
      _
    $region59: #{tpu_custom_call.1} parent=1 // pred_check_branch
      %359 = sbr.rel (0) target = $region61
    $region60: #{tpu_custom_call.1} parent=1 // pred_region
      %361 = vsyncadd [#allocation13], 0
      %s362 = sshll.u32 [#allocation14], 4
      %s363 = int_to_ptr.vmem [resolvable:$true] %s362
      %s364 = sshll.u32 %s10, 4
      %s365 = int_to_ptr.hbm [resolvable:$true] %s364
      %370 = dma.vmem_to_hbm [thread:$0]  %s363, 256, %s365, [#allocation13], 128, 128, 8
    $region61: #{tpu_custom_call.1} parent=1 // pred_fallthru
      _
    // Predicated region
    $region62: #{tpu_custom_call.1} parent=1 // pred_check
      _
    $region63: #{tpu_custom_call.1} parent=1 // pred_check_branch
      %372 = sbr.rel (0) target = $region65
    $region64: #{tpu_custom_call.1} parent=1 // pred_region
      %374 = dma.done [#allocation5], 256
    $region65: #{tpu_custom_call.1} parent=1 // pred_fallthru
      _
    // Predicated region
    $region66: #{tpu_custom_call.1} parent=1 // pred_check
      _
    $region67: #{tpu_custom_call.1} parent=1 // pred_check_branch
      %376 = sbr.rel (0) target = $region69
    $region68: #{tpu_custom_call.1} parent=1 // pred_region
      %378 = dma.done [#allocation13], 256
    $region69: #{tpu_custom_call.1} parent=1 // pred_fallthru
      _
    // Predicated region
    $region70: #{tpu_custom_call.1} parent=1 // pred_check
      _
    $region71: #{tpu_custom_call.1} parent=1 // pred_check_branch
      %380 = sbr.rel (0) target = $region73
    $region72: #{tpu_custom_call.1} parent=1 // pred_region
      %382 = dma.done [#allocation13], 256
    $region73: #{tpu_custom_call.1} parent=1 // pred_fallthru
      _
    %383 = vsyncpa [#allocation4], 1
    %384 = vsyncpa [#allocation7], 1
    %385 = vsyncpa [#allocation10], 1
    %386 = vsyncpa [#allocation5], 1
    %387 = vsyncpa [#allocation13], 1

</llo_original>
